<compile_context>
chip_gen: v7x
topology: tpu7x:2x2x1
jax: 0.10.0
libtpu: 0.0.40
codegen_flags: <defaults>
</compile_context>

<pallas_src>
import functools

import jax
import jax.numpy as jnp
from jax.experimental import pallas as pl
from jax.experimental.pallas import tpu as pltpu

# Global flag from the original module's file scope.
DISTANCE_THRESHOLD_ENABLED = True

LANES = 128  # lane width (last dim)


def _device_kind():
    try:
        return jax.devices()[0].device_kind.lower()
    except Exception:
        return ""


_KIND = _device_kind()
# Only megacore parts (v4, v7x: 2 TensorCores/chip) benefit from sharding the
# reduction over a leading "parallel" grid axis; on 1-TC chips it is just a
# serial outer loop plus wasted duplicate-block DMA.
NUM_CORE_SPLITS = 2 if ("v4" in _KIND or "v7" in _KIND) else 1
# Rows (sublanes) per grid step.  4096 rows x 128 lanes x 4 B = 2 MiB / input
# block; 8192 (4 MiB) on v7x where HBM is ~3.2 TB/s and per-step overhead is a
# larger fraction of the DMA time.  Double-buffered totals stay far below the
# physical VMEM on every generation (v5e/v6e 128 MiB, v7x 64 MiB).
TM_MAX = 8192 if "v7" in _KIND else 4096
VMEM_LIMIT_BYTES = (48 if "v7" in _KIND else 32) * 1024 * 1024


def _masked_mse_kernel(o_ref, t_ref, sum_ref, cnt_ref, *,
                       tm, rows, nblocks, steps_per_core, needs_mask):
    c = pl.program_id(0)
    i = pl.program_id(1)

    @pl.when(i == 0)
    def _():
        sum_ref[...] = jnp.zeros_like(sum_ref)
        cnt_ref[...] = jnp.zeros_like(cnt_ref)

    o = o_ref[...].astype(jnp.float32)
    t = t_ref[...]
    diff = o - t.astype(jnp.float32)
    sq = diff * diff
    valid = jnp.logical_not(jnp.isnan(t))

    def accumulate(v):
        # Tree-reduce the fresh block in registers down to one (8,128) vreg,
        # then add it into the (output-resident) accumulator: pure VPU work,
        # no large-accumulator VMEM ld/st traffic.
        contrib = jnp.where(v, sq, 0.0)
        sum_ref[...] += jnp.sum(contrib.reshape(tm // 8, 8, LANES), axis=0)
        cnt_ref[...] += jnp.sum(
            v.astype(jnp.int32).reshape(tm // 8, 8, LANES), axis=0)

    if needs_mask:
        logical_block = c * steps_per_core + i

        # Bulk blocks: unmasked accumulate (no iota/compare cost).
        @pl.when(logical_block < nblocks - 1)
        def _():
            accumulate(valid)

        # Last real block (possibly partial) and clamped/duplicated blocks
        # past the logical end: mask rows >= rows.
        @pl.when(logical_block >= nblocks - 1)
        def _():
            row_ids = logical_block * tm + jax.lax.broadcasted_iota(
                jnp.int32, sq.shape, 0)
            accumulate(jnp.logical_and(valid, row_ids < rows))
    else:
        accumulate(valid)


def _plain_mse_kernel(o_ref, t_ref, sum_ref, *,
                      tm, rows, nblocks, steps_per_core, needs_mask):
    c = pl.program_id(0)
    i = pl.program_id(1)

    @pl.when(i == 0)
    def _():
        sum_ref[...] = jnp.zeros_like(sum_ref)

    o = o_ref[...].astype(jnp.float32)
    t = t_ref[...].astype(jnp.float32)
    diff = o - t
    sq = diff * diff

    def accumulate(vals):
        sum_ref[...] += jnp.sum(vals.reshape(tm // 8, 8, LANES), axis=0)

    if needs_mask:
        logical_block = c * steps_per_core + i

        @pl.when(logical_block < nblocks - 1)
        def _():
            accumulate(sq)

        @pl.when(logical_block >= nblocks - 1)
        def _():
            row_ids = logical_block * tm + jax.lax.broadcasted_iota(
                jnp.int32, sq.shape, 0)
            accumulate(jnp.where(row_ids < rows, sq, 0.0))
    else:
        accumulate(sq)


@functools.partial(jax.jit, static_argnames=("distance_threshold_enabled",))
def masked_mse_loss(outputs, targets, *,
                    distance_threshold_enabled=DISTANCE_THRESHOLD_ENABLED):
    assert outputs.shape == targets.shape, "MSELoss requires matching shapes"
    n = outputs.size
    masked = bool(distance_threshold_enabled)

    o_flat = outputs.reshape(-1)
    t_flat = targets.reshape(-1)

    # Main body: largest prefix that is a multiple of 8*128 (free, contiguous
    # reshape to a lane-dense (rows, 128) view).  The short tail is handled
    # with a tiny fused jnp reduction below -- no whole-tensor pad copy.
    min_chunk = 8 * LANES
    n_main = (n // min_chunk) * min_chunk
    n_tail = n - n_main

    main_sum = jnp.float32(0.0)
    main_cnt = jnp.int32(0)

    if n_main > 0:
        rows = n_main // LANES                  # multiple of 8
        o2 = o_flat[:n_main].reshape(rows, LANES)
        t2 = t_flat[:n_main].reshape(rows, LANES)

        # Balanced, 8-aligned block height.
        nblocks = max(pl.cdiv(rows, TM_MAX), NUM_CORE_SPLITS)
        tm = pl.cdiv(pl.cdiv(rows, nblocks), 8) * 8
        nblocks = pl.cdiv(rows, tm)
        steps_per_core = pl.cdiv(nblocks, NUM_CORE_SPLITS)
        # Row masking is needed only if the last block is partial or some
        # logical blocks fall entirely past the end of the array.
        needs_mask = (NUM_CORE_SPLITS * steps_per_core * tm) != rows

        if needs_mask:
            def in_map(c, i):
                # Clamp so the DMA never targets a fully out-of-bounds block;
                # such (duplicated) blocks are fully masked in-kernel.
                return (jnp.minimum(c * steps_per_core + i, nblocks - 1), 0)
        else:
            def in_map(c, i):
                return (c * steps_per_core + i, 0)

        in_specs = [
            pl.BlockSpec((tm, LANES), in_map),
            pl.BlockSpec((tm, LANES), in_map),
        ]
        # One (8,128) lane-dense partial-sum block per core split, resident
        # across the inner (reduction) grid axis.
        part_spec = pl.BlockSpec((None, 8, LANES), lambda c, i: (c, 0, 0))

        grid = (NUM_CORE_SPLITS, steps_per_core)
        compiler_params = pltpu.CompilerParams(
            dimension_semantics=("parallel", "arbitrary"),
            vmem_limit_bytes=VMEM_LIMIT_BYTES)
        cost = pl.CostEstimate(
            flops=3 * n_main,
            transcendentals=0,
            bytes_accessed=o2.size * o2.dtype.itemsize
            + t2.size * t2.dtype.itemsize,
        )
        statics = dict(tm=tm, rows=rows, nblocks=nblocks,
                       steps_per_core=steps_per_core, needs_mask=needs_mask)

        if masked:
            psum, pcnt = pl.pallas_call(
                functools.partial(_masked_mse_kernel, **statics),
                out_shape=(
                    jax.ShapeDtypeStruct((NUM_CORE_SPLITS, 8, LANES),
                                         jnp.float32),
                    jax.ShapeDtypeStruct((NUM_CORE_SPLITS, 8, LANES),
                                         jnp.int32),
                ),
                grid_spec=pltpu.PrefetchScalarGridSpec(
                    num_scalar_prefetch=0,
                    grid=grid,
                    in_specs=in_specs,
                    out_specs=(part_spec, part_spec),
                ),
                compiler_params=compiler_params,
                cost_estimate=cost,
            )(o2, t2)
            main_sum = jnp.sum(psum)
            main_cnt = jnp.sum(pcnt)
        else:
            psum = pl.pallas_call(
                functools.partial(_plain_mse_kernel, **statics),
                out_shape=jax.ShapeDtypeStruct((NUM_CORE_SPLITS, 8, LANES),
                                               jnp.float32),
                grid_spec=pltpu.PrefetchScalarGridSpec(
                    num_scalar_prefetch=0,
                    grid=grid,
                    in_specs=in_specs,
                    out_specs=part_spec,
                ),
                compiler_params=compiler_params,
                cost_estimate=cost,
            )(o2, t2)
            main_sum = jnp.sum(psum)

    # Tail (< 1024 elements): tiny fused reduction, reads only the tail bytes.
    tail_sum = jnp.float32(0.0)
    tail_cnt = jnp.int32(0)
    if n_tail > 0:
        o_tail = o_flat[n_main:].astype(jnp.float32)
        t_tail = t_flat[n_main:]
        sq_tail = (o_tail - t_tail.astype(jnp.float32)) ** 2
        if masked:
            v_tail = jnp.logical_not(jnp.isnan(t_tail))
            tail_sum = jnp.sum(jnp.where(v_tail, sq_tail, 0.0))
            tail_cnt = jnp.sum(v_tail.astype(jnp.int32))
        else:
            tail_sum = jnp.sum(sq_tail)

    total = main_sum + tail_sum
    if masked:
        # NOTE: int32 count is exact for < 2^31 valid elements; 0/0 -> NaN,
        # matching torch's mean over an empty selection.
        count = (main_cnt + tail_cnt).astype(jnp.float32)
        return (total / count).astype(jnp.float32)
    else:
        return (total / jnp.float32(n)).astype(jnp.float32)


if __name__ == "__main__":
    key = jax.random.PRNGKey(0)
    k1, k2, k3 = jax.random.split(key, 3)

    # Small NCHW-like shapes consistent with the module's elementwise usage.
    shape = (2, 4, 16, 16)  # n = 2048 -> exercises the Pallas main body
    outputs = jax.random.normal(k1, shape, dtype=jnp.float32)
    targets_clean = jax.random.normal(k2, shape, dtype=jnp.float32)
    nan_mask = jax.random.bernoulli(k3, p=0.25, shape=shape)
    targets = jnp.where(nan_mask, jnp.nan, targets_clean)

    # Masked (DISTANCE_THRESHOLD_ENABLED=True) path.
    loss = jax.block_until_ready(masked_mse_loss(outputs, targets))
    valid = jnp.logical_not(jnp.isnan(targets))
    ref = jnp.sum(jnp.where(valid, (outputs - targets) ** 2, 0.0)) / jnp.sum(
        valid.astype(jnp.float32))
    assert jnp.allclose(loss, ref, rtol=1e-5, atol=1e-6), (loss, ref)

    # Plain-MSE (threshold disabled) path on clean targets.
    loss2 = jax.block_until_ready(
        masked_mse_loss(outputs, targets_clean,
                        distance_threshold_enabled=False))
    ref2 = jnp.mean((outputs - targets_clean) ** 2)
    assert jnp.allclose(loss2, ref2, rtol=1e-5, atol=1e-6), (loss2, ref2)

    # Ragged size > 1024: exercises the Pallas main body + jnp tail path.
    shape3 = (2, 5, 11, 11)  # n = 1210 -> main 1024 + tail 186
    o3 = jax.random.normal(k1, shape3, dtype=jnp.float32)
    t3 = jax.random.normal(k2, shape3, dtype=jnp.float32)
    t3 = jnp.where(jax.random.bernoulli(k3, p=0.25, shape=shape3), jnp.nan, t3)
    loss3 = jax.block_until_ready(masked_mse_loss(o3, t3))
    v3 = jnp.logical_not(jnp.isnan(t3))
    ref3 = jnp.sum(jnp.where(v3, (o3 - t3) ** 2, 0.0)) / jnp.sum(
        v3.astype(jnp.float32))
    assert jnp.allclose(loss3, ref3, rtol=1e-5, atol=1e-6), (loss3, ref3)

    # Tiny size < 1024: pure-tail path (no pallas call).
    shape4 = (2, 3, 10, 10)  # n = 600
    o4 = jax.random.normal(k1, shape4, dtype=jnp.float32)
    t4 = jax.random.normal(k2, shape4, dtype=jnp.float32)
    t4 = jnp.where(jax.random.bernoulli(k3, p=0.25, shape=shape4), jnp.nan, t4)
    loss4 = jax.block_until_ready(masked_mse_loss(o4, t4))
    v4 = jnp.logical_not(jnp.isnan(t4))
    ref4 = jnp.sum(jnp.where(v4, (o4 - t4) ** 2, 0.0)) / jnp.sum(
        v4.astype(jnp.float32))
    assert jnp.allclose(loss4, ref4, rtol=1e-5, atol=1e-6), (loss4, ref4)

    print("KERNEL_OK")
</pallas_src>

<mosaic_0001>
module attributes {stable_mosaic.version = 11 : i64} {
  func.func @_masked_mse_kernel(%arg0: i32, %arg1: i32, %arg2: memref<16x128xf32, #tpu.memory_space<vmem>>, %arg3: memref<16x128xf32, #tpu.memory_space<vmem>>, %arg4: memref<1x8x128xf32, #tpu.memory_space<vmem>>, %arg5: memref<1x8x128xi32, #tpu.memory_space<vmem>>) attributes {dimension_semantics = [#tpu.dimension_semantics<parallel>, #tpu.dimension_semantics<arbitrary>], iteration_bounds = array<i64: 1, 1>, scalar_prefetch = 0 : i64, scratch_operands = 0 : i64, tpu.core_type = #tpu.core_type<tc>, window_params = [{transform_indices = @transform_0, window_bounds = array<i64: 16, 128>}, {transform_indices = @transform_1, window_bounds = array<i64: 16, 128>}, {transform_indices = @transform_2, window_bounds = array<i64: 1, 8, 128>}, {transform_indices = @transform_3, window_bounds = array<i64: 1, 8, 128>}]} {
    %c0_i32 = arith.constant 0 : i32
    %0 = arith.cmpi eq, %arg1, %c0_i32 : i32
    %1 = arith.extui %0 : i1 to i32
    %c0_i32_0 = arith.constant 0 : i32
    %2 = arith.cmpi ne, %1, %c0_i32_0 : i32
    scf.if %2 {
      %cst_19 = arith.constant 0.000000e+00 : f32
      %28 = vector.broadcast %cst_19 : f32 to vector<8x128xf32>
      %c0_20 = arith.constant 0 : index
      %c0_21 = arith.constant 0 : index
      %c0_22 = arith.constant 0 : index
      %29 = vector.load %arg4[%c0_20, %c0_21, %c0_22] : memref<1x8x128xf32, #tpu.memory_space<vmem>>, vector<1x8x128xf32>
      %30 = vector.shape_cast %29 : vector<1x8x128xf32> to vector<8x128xf32>
      %31 = vector.shape_cast %28 : vector<8x128xf32> to vector<1x8x128xf32>
      tpu.vector_store %arg4[%c0_20, %c0_21, %c0_22], %31 {strides = array<i32>} : memref<1x8x128xf32, #tpu.memory_space<vmem>>, vector<1x8x128xf32>,
      %c0_i32_23 = arith.constant 0 : i32
      %32 = vector.broadcast %c0_i32_23 : i32 to vector<8x128xi32>
      %c0_24 = arith.constant 0 : index
      %c0_25 = arith.constant 0 : index
      %c0_26 = arith.constant 0 : index
      %33 = vector.load %arg5[%c0_24, %c0_25, %c0_26] : memref<1x8x128xi32, #tpu.memory_space<vmem>>, vector<1x8x128xi32>
      %34 = vector.shape_cast %33 : vector<1x8x128xi32> to vector<8x128xi32>
      %35 = vector.shape_cast %32 : vector<8x128xi32> to vector<1x8x128xi32>
      tpu.vector_store %arg5[%c0_24, %c0_25, %c0_26], %35 {strides = array<i32>} : memref<1x8x128xi32, #tpu.memory_space<vmem>>, vector<1x8x128xi32>,
    } else {
    }
    %c0 = arith.constant 0 : index
    %c0_1 = arith.constant 0 : index
    %3 = vector.load %arg2[%c0, %c0_1] : memref<16x128xf32, #tpu.memory_space<vmem>>, vector<16x128xf32>
    %c0_2 = arith.constant 0 : index
    %c0_3 = arith.constant 0 : index
    %4 = vector.load %arg3[%c0_2, %c0_3] : memref<16x128xf32, #tpu.memory_space<vmem>>, vector<16x128xf32>
    %5 = arith.subf %3, %4 : vector<16x128xf32>
    %6 = arith.mulf %5, %5 : vector<16x128xf32>
    %7 = arith.cmpf one, %4, %4 : vector<16x128xf32>
    %cst = arith.constant dense<true> : vector<16x128xi1>
    %8 = arith.xori %7, %cst : vector<16x128xi1>
    %cst_4 = arith.constant 0.000000e+00 : f32
    %9 = vector.broadcast %cst_4 : f32 to vector<16x128xf32>
    %10 = arith.select %8, %6, %9 : vector<16x128xi1>, vector<16x128xf32>
    %c0_5 = arith.constant 0 : index
    %c0_6 = arith.constant 0 : index
    %c0_7 = arith.constant 0 : index
    %11 = vector.load %arg4[%c0_5, %c0_6, %c0_7] : memref<1x8x128xf32, #tpu.memory_space<vmem>>, vector<1x8x128xf32>
    %12 = vector.shape_cast %11 : vector<1x8x128xf32> to vector<8x128xf32>
    %13 = vector.shape_cast %10 : vector<16x128xf32> to vector<2x8x128xf32>
    %cst_8 = arith.constant dense<0.000000e+00> : vector<8x128xf32>
    %14 = vector.multi_reduction <add>, %13, %cst_8 [0] : vector<2x8x128xf32> to vector<8x128xf32>
    %15 = arith.addf %12, %14 : vector<8x128xf32>
    %c0_9 = arith.constant 0 : index
    %c0_10 = arith.constant 0 : index
    %c0_11 = arith.constant 0 : index
    %16 = vector.load %arg4[%c0_9, %c0_10, %c0_11] : memref<1x8x128xf32, #tpu.memory_space<vmem>>, vector<1x8x128xf32>
    %17 = vector.shape_cast %16 : vector<1x8x128xf32> to vector<8x128xf32>
    %18 = vector.shape_cast %15 : vector<8x128xf32> to vector<1x8x128xf32>
    tpu.vector_store %arg4[%c0_9, %c0_10, %c0_11], %18 {strides = array<i32>} : memref<1x8x128xf32, #tpu.memory_space<vmem>>, vector<1x8x128xf32>,
    %c0_12 = arith.constant 0 : index
    %c0_13 = arith.constant 0 : index
    %c0_14 = arith.constant 0 : index
    %19 = vector.load %arg5[%c0_12, %c0_13, %c0_14] : memref<1x8x128xi32, #tpu.memory_space<vmem>>, vector<1x8x128xi32>
    %20 = vector.shape_cast %19 : vector<1x8x128xi32> to vector<8x128xi32>
    %21 = arith.extui %8 : vector<16x128xi1> to vector<16x128xi32>
    %22 = vector.shape_cast %21 : vector<16x128xi32> to vector<2x8x128xi32>
    %cst_15 = arith.constant dense<0> : vector<8x128xi32>
    %23 = vector.multi_reduction <add>, %22, %cst_15 [0] : vector<2x8x128xi32> to vector<8x128xi32>
    %24 = arith.addi %20, %23 : vector<8x128xi32>
    %c0_16 = arith.constant 0 : index
    %c0_17 = arith.constant 0 : index
    %c0_18 = arith.constant 0 : index
    %25 = vector.load %arg5[%c0_16, %c0_17, %c0_18] : memref<1x8x128xi32, #tpu.memory_space<vmem>>, vector<1x8x128xi32>
    %26 = vector.shape_cast %25 : vector<1x8x128xi32> to vector<8x128xi32>
    %27 = vector.shape_cast %24 : vector<8x128xi32> to vector<1x8x128xi32>
    tpu.vector_store %arg5[%c0_16, %c0_17, %c0_18], %27 {strides = array<i32>} : memref<1x8x128xi32, #tpu.memory_space<vmem>>, vector<1x8x128xi32>,
    return
  }
  func.func @transform_0(%arg0: i32, %arg1: i32) -> (i32, i32) {
    %c1_i32 = arith.constant 1 : i32
    %0 = arith.muli %arg0, %c1_i32 : i32
    %1 = arith.addi %0, %arg1 : i32
    %c0_i32 = arith.constant 0 : i32
    %c0_i32_0 = arith.constant 0 : i32
    return %1, %c0_i32 : i32, i32
  }
  func.func @transform_1(%arg0: i32, %arg1: i32) -> (i32, i32) {
    %c1_i32 = arith.constant 1 : i32
    %0 = arith.muli %arg0, %c1_i32 : i32
    %1 = arith.addi %0, %arg1 : i32
    %c0_i32 = arith.constant 0 : i32
    %c0_i32_0 = arith.constant 0 : i32
    return %1, %c0_i32 : i32, i32
  }
  func.func @transform_2(%arg0: i32, %arg1: i32) -> (i32, i32, i32) {
    %c0_i32 = arith.constant 0 : i32
    %c0_i32_0 = arith.constant 0 : i32
    %c0_i32_1 = arith.constant 0 : i32
    return %arg0, %c0_i32, %c0_i32_0 : i32, i32, i32
  }
  func.func @transform_3(%arg0: i32, %arg1: i32) -> (i32, i32, i32) {
    %c0_i32 = arith.constant 0 : i32
    %c0_i32_0 = arith.constant 0 : i32
    %c0_i32_1 = arith.constant 0 : i32
    return %arg0, %c0_i32, %c0_i32_0 : i32, i32, i32
  }
}

</mosaic_0001>

<llo_original>
// kernel: masked_mse_loss.1
$region0: #{masked_mse_loss.1}
  #allocation0 [shape = 'u32[]', space=smem, size = 0x4, offset = 0x4, fixed_abs, tag = 'smem constant byte address 0x4 - core index']
  #allocation1 [shape = 'u32[144,128]{1,0:T(1,128)}', space=vmem, size = 0x12000, scoped, tag = 'internal scratch']
  %s0 = inlined_call_operand.vmem [shape: f32[16,128], index: 0, kind: input, shape index: {}]
  %s1 = inlined_call_operand.vmem [shape: f32[16,128], index: 1, kind: input, shape index: {}]
  %s2 = inlined_call_operand.vmem [shape: f32[1,8,128], index: 2, kind: output, shape index: {0}]
  %s3 = inlined_call_operand.vmem [shape: s32[1,8,128], index: 3, kind: output, shape index: {1}]
  %4 = xla_tuple %s2, %s3
  %s5 = sld [smem:[#allocation0]]
  $region30: #{masked_mse_loss.1} parent=0
    _
  %s7 = ssub.s32 1, %s5
  %s8 = scalar_select 0, %s7, %s5
  // Predicated region
  $region2: #{masked_mse_loss.1} parent=0 // pred_check
    _
  $region3: #{masked_mse_loss.1} parent=0 // pred_check_branch
    %10 = sbr.rel (0) target = $region5
  $region4: #{masked_mse_loss.1} parent=0 // pred_region
    %s11 = sadd.s32 0, 0
    %s12 = smul.u32 2, %s11
    %p13 = scmp.lt.s32.totalorder %s12, 1
    %s14 = scalar_select %p13, %s12, 1
    %s15 = smul.addr %s14, 8
    %s16 = scalar_lea.vmem %s0, %s15
    %s17 = sadd.s32 0, 0
    %s18 = smul.u32 2, %s17
  $region5: #{masked_mse_loss.1} parent=0 // pred_fallthru
    _
  // Predicated region
  $region6: #{masked_mse_loss.1} parent=0 // pred_check
    _
  $region7: #{masked_mse_loss.1} parent=0 // pred_check_branch
    %20 = sbr.rel (0) target = $region9
  $region8: #{masked_mse_loss.1} parent=0 // pred_region
    %s21 = sadd.s32 0, 0
    %s22 = smul.u32 2, %s21
    %p23 = scmp.lt.s32.totalorder %s22, 1
    %s24 = scalar_select %p23, %s22, 1
    %s25 = smul.addr %s24, 8
    %s26 = scalar_lea.vmem %s1, %s25
    %s27 = sadd.s32 0, 0
    %s28 = smul.u32 2, %s27
  $region9: #{masked_mse_loss.1} parent=0 // pred_fallthru
    _
  %s29 = sadd.s32 0, 0
  %s30 = smul.u32 2, %s29
  %p31 = scmp.lt.s32.totalorder %s30, 1
  %s32 = scalar_select %p31, %s30, 1
  %s33 = smul.addr %s32, 8
  %s34 = scalar_lea.vmem %s0, %s33
  %s35 = sadd.s32 0, 0
  %s36 = smul.u32 2, %s35
  %p37 = scmp.lt.s32.totalorder %s36, 1
  %s38 = scalar_select %p37, %s36, 1
  %s39 = smul.addr %s38, 8
  %s40 = scalar_lea.vmem %s1, %s39
  %s41 = sadd.s32 0, 0
  %s42 = smul.u32 2, %s41
  %p43 = scmp.lt.s32.totalorder %s42, 1
  %s44 = scalar_select %p43, %s42, 1
  %s45 = smul.addr %s44, 8
  %s46 = scalar_lea.vmem %s0, %s45
  %s47 = sadd.s32 0, 0
  %s48 = smul.u32 2, %s47
  %s49 = sadd.s32 0, 0
  %s50 = smul.u32 2, %s49
  %p51 = scmp.lt.s32.totalorder %s50, 1
  %s52 = scalar_select %p51, %s50, 1
  %s53 = smul.addr %s52, 8
  %s54 = scalar_lea.vmem %s1, %s53
  %s55 = sadd.s32 0, 0
  %s56 = smul.u32 2, %s55
  %p57 = scmp.eq.s32.totalorder 0, 0
  // Predicated region
  $region10: #{masked_mse_loss.1} parent=0 // pred_check
    %p58 = pneg %p57
  $region11: #{masked_mse_loss.1} parent=0 // pred_check_branch
    %60 = sbr.rel (%p58) target = $region13
  $region12: #{masked_mse_loss.1} parent=0 // pred_region
    %61 = vst [vmem:[%s2] sm:$0xff] 0.0
    %62 = vst [vmem:[%s3] sm:$0xff] 0
  $region13: #{masked_mse_loss.1} parent=0 // pred_fallthru
    _
  %v63 = vld [vmem:[%s46] sm:$0xff]
  %v64 = vld [vmem:[%s46 + $0x8] sm:$0xff]
  %v65 = vld [vmem:[%s54] sm:$0xff]
  %v66 = vld [vmem:[%s54 + $0x8] sm:$0xff]
  %v67 = vsub.f32 %v63, %v65
  %v68 = vsub.f32 %v64, %v66
  %v69 = vmul.f32 %v67, %v67
  %v70 = vmul.f32 %v68, %v68
  %vm71 = vcmp.ne.f32.partialorder %v65, %v65
  %vm72 = vcmp.ne.f32.partialorder %v66, %v66
  %vm73 = vmxor %vm71, 1
  %vm74 = vmxor %vm72, 1
  %v75 = vsel %vm73, %v69, 0.0
  %v76 = vsel %vm74, %v70, 0.0
  %v77 = vld [vmem:[%s2] sm:$0xff]
  %v78 = vadd.f32 %v75, %v76
  %v79 = vadd.f32 %v77, %v78
  %80 = vst [vmem:[%s2] sm:$0xff] %v79
  %v81 = vld [vmem:[%s3] sm:$0xff]
  %v82 = vsel %vm73, 1, 0
  %v83 = vsel %vm74, 1, 0
  %v84 = vadd.s32 %v82, %v83
  %v85 = vadd.s32 %v81, %v84
  %86 = vst [vmem:[%s3] sm:$0xff] %v85
  // Predicated region
  $region14: #{masked_mse_loss.1} parent=0 // pred_check
    _
  $region15: #{masked_mse_loss.1} parent=0 // pred_check_branch
    %88 = sbr.rel (0) target = $region17
  $region16: #{masked_mse_loss.1} parent=0 // pred_region
    _
  $region17: #{masked_mse_loss.1} parent=0 // pred_fallthru
    _
  // Predicated region
  $region18: #{masked_mse_loss.1} parent=0 // pred_check
    _
  $region19: #{masked_mse_loss.1} parent=0 // pred_check_branch
    %90 = sbr.rel (0) target = $region21
  $region20: #{masked_mse_loss.1} parent=0 // pred_region
    _
  $region21: #{masked_mse_loss.1} parent=0 // pred_fallthru
    _
  // Predicated region
  $region22: #{masked_mse_loss.1} parent=0 // pred_check
    _
  $region23: #{masked_mse_loss.1} parent=0 // pred_check_branch
    %92 = sbr.rel (0) target = $region25
  $region24: #{masked_mse_loss.1} parent=0 // pred_region
    _
  $region25: #{masked_mse_loss.1} parent=0 // pred_fallthru
    _
  // Predicated region
  $region26: #{masked_mse_loss.1} parent=0 // pred_check
    _
  $region27: #{masked_mse_loss.1} parent=0 // pred_check_branch
    %94 = sbr.rel (0) target = $region29
  $region28: #{masked_mse_loss.1} parent=0 // pred_region
    _
  $region29: #{masked_mse_loss.1} parent=0 // pred_fallthru
    _

</llo_original>
